<compile_context>
chip_gen: v5e
topology: v5e:2x2
jax: 0.10.0
libtpu: 0.0.40
codegen_flags: <defaults>
</compile_context>

<pallas_src>
import functools
import math

import jax
import jax.numpy as jnp
from jax.experimental import pallas as pl
from jax.experimental.pallas import tpu as pltpu


# 48 MiB scoped-VMEM request: below v7x's 64 MiB/TC physical VMEM with pipelining
# headroom; raise toward 64-100 MiB on v5e/v6e for very large shapes.
_VMEM_LIMIT = 48 * 1024 * 1024


# ----------------------------- tiling helpers ------------------------------

def _pick_row_tile(n_rows: int, d_in: int, d_out: int, itemsize: int = 4,
                   vmem_budget: int = 40 * 1024 * 1024) -> int:
    """VMEM-aware row tile for the weight-resident matmul kernel.

    Keeps (resident weight block, conservatively counted with 2 pipeline buffers) +
    (double-buffered input/output row tiles) under `vmem_budget`, and returns the
    largest multiple-of-8 divisor of n_rows below that cap.
    """
    weight_bytes = 2 * d_in * d_out * itemsize          # 2 pipeline buffers
    per_row_bytes = 2 * (d_in + d_out) * itemsize       # in + out, double-buffered
    avail = max(vmem_budget - weight_bytes, 8 * per_row_bytes)
    cap = min(int(avail // per_row_bytes), 2048)
    if n_rows <= cap:
        return n_rows
    t = cap - (cap % 8)
    while t >= 8:
        if n_rows % t == 0:
            return t
        t -= 8
    return n_rows  # full-array block fallback (legal; forfeits pipelining)


# --------------------- weight-resident linear (matmul) kernel ----------------

def _linear_kernel(x_ref, w_ref, o_ref):
    # Single MXU matmul; the (d_in, d_out) weight has a constant block index so it is
    # fetched once and stays resident across the row-tile grid.
    o_ref[...] = jnp.dot(x_ref[...], w_ref[...],
                         preferred_element_type=jnp.float32).astype(o_ref.dtype)


def linear_pallas(x2d, w_t):
    """(N, d_in) @ (d_in, d_out) with lane-dense row tiles and a resident weight."""
    n, d_in = x2d.shape
    d_out = w_t.shape[1]
    row_tile = _pick_row_tile(n, d_in, d_out, x2d.dtype.itemsize)
    return pl.pallas_call(
        _linear_kernel,
        out_shape=jax.ShapeDtypeStruct((n, d_out), x2d.dtype),
        grid_spec=pltpu.PrefetchScalarGridSpec(
            num_scalar_prefetch=0,
            grid=(n // row_tile,),
            in_specs=[pl.BlockSpec((row_tile, d_in), lambda i: (i, 0)),
                      pl.BlockSpec((d_in, d_out), lambda i: (0, 0))],
            out_specs=pl.BlockSpec((row_tile, d_out), lambda i: (i, 0)),
        ),
        compiler_params=pltpu.CompilerParams(
            dimension_semantics=("parallel",),
            vmem_limit_bytes=_VMEM_LIMIT,
        ),
    )(x2d, w_t)


# ------------------- fused relative-attention core kernel -------------------

def _rel_attn_kernel(qkv_ref, bias_ref, mask_ref, o_ref, *, n_heads, d_k, sm_scale):
    d_model = n_heads * d_k
    qkv = qkv_ref[0].astype(jnp.float32)          # (S, 3*D) lane-dense load
    neg = mask_ref[0, 0] == 0                     # (S, S), hoisted out of the head loop

    outs = []
    for h in range(n_heads):                      # static unroll; all slices are static
        q_h = qkv[:, h * d_k:(h + 1) * d_k] * sm_scale
        k_h = qkv[:, d_model + h * d_k: d_model + (h + 1) * d_k]
        v_h = qkv[:, 2 * d_model + h * d_k: 2 * d_model + (h + 1) * d_k]

        # content scores on the MXU (contract d_k, no explicit transpose)
        s_c = jax.lax.dot_general(
            q_h, k_h, dimension_numbers=(((1,), (1,)), ((), ())),
            preferred_element_type=jnp.float32)   # (S, S)
        scores = s_c + bias_ref[0, h].astype(jnp.float32)   # pre-scaled relative bias
        scores = jnp.where(neg, -jnp.inf, scores)            # masked_fill(mask == 0, -inf)

        # numerically-stable softmax; reciprocal on the (otherwise idle) EUP slot
        smax = jnp.max(scores, axis=-1, keepdims=True)
        e = jnp.exp(scores - smax)
        denom = jnp.sum(e, axis=-1, keepdims=True)
        p = e * pl.reciprocal(denom, approx=True)
        # TODO(synk): dropout(p_attn) omitted — identity under eval / dropout p = 0.

        outs.append(jnp.dot(p, v_h, preferred_element_type=jnp.float32))  # (S, d_k)

    # single lane-dense (S, D) store; head order matches torch's transpose+view merge
    o_ref[0] = jnp.concatenate(outs, axis=-1).astype(o_ref.dtype)


def rel_attention_pallas(qkv, rel_bias, mask_i8, *, n_heads, d_k, sm_scale):
    b, s, d3 = qkv.shape
    d = d3 // 3
    kernel = functools.partial(_rel_attn_kernel, n_heads=n_heads, d_k=d_k,
                               sm_scale=sm_scale)
    return pl.pallas_call(
        kernel,
        out_shape=jax.ShapeDtypeStruct((b, s, d), qkv.dtype),
        grid_spec=pltpu.PrefetchScalarGridSpec(
            num_scalar_prefetch=0,
            grid=(b,),
            in_specs=[pl.BlockSpec((1, s, d3), lambda bi: (bi, 0, 0)),
                      pl.BlockSpec((1, n_heads, s, s), lambda bi: (bi, 0, 0, 0)),
                      pl.BlockSpec((1, 1, s, s), lambda bi: (bi, 0, 0, 0))],
            out_specs=pl.BlockSpec((1, s, d), lambda bi: (bi, 0, 0)),
        ),
        compiler_params=pltpu.CompilerParams(
            dimension_semantics=("parallel",),   # megacore splits over batch on v7x
            vmem_limit_bytes=_VMEM_LIMIT,
        ),
    )(qkv, rel_bias, mask_i8)


# ------------------------------ module forward ------------------------------

def relative_mha_forward(q_in, k_in, v_in, mask, wq, wk, wv, wo, rel_table,
                         h: int, max_len: int):
    """Forward pass of RelativeMultiHeadAttentionBlock.

    q_in/k_in/v_in: (B, S, d_model); mask broadcastable to (B, 1, S, S) or None.
    wq/wk/wv/wo: PyTorch nn.Linear weight layout (out, in); rel_table: (2*max_len-1, d_k).
    """
    b, s, d = q_in.shape
    d_k = d // h
    sm_scale = 1.0 / math.sqrt(d_k)

    # --- fused Q|K|V projection: one (row_tile, D) @ (D, 3D) MXU matmul per tile ---
    if (q_in is k_in) and (k_in is v_in):
        w_qkv_t = jnp.concatenate([wq.T, wk.T, wv.T], axis=1)        # (D, 3D)
        qkv2d = linear_pallas(q_in.reshape(b * s, d), w_qkv_t)        # (B*S, 3D)
    else:  # cross-attention: separate inputs, weight-resident matmul per stream
        qkv2d = jnp.concatenate(
            [linear_pallas(q_in.reshape(b * s, d), wq.T),
             linear_pallas(k_in.reshape(b * s, d), wk.T),
             linear_pallas(v_in.reshape(b * s, d), wv.T)], axis=-1)
    qkv = qkv2d.reshape(b, s, 3 * d)

    # --- relative-position score bias: tiny (2S-1, d_k) table, MXU contraction, then
    #     the Transformer-XL-style per-row skew gather (no (S,S,d_k) table anywhere) ---
    rel_idx = jnp.clip(jnp.arange(2 * s - 1) - (s - 1) + max_len - 1,
                       0, 2 * max_len - 2)
    rel_used = rel_table[rel_idx]                                     # (2S-1, d_k)
    q4 = qkv[..., :d].reshape(b, s, h, d_k)
    qr = jnp.einsum("bshd,rd->bhsr", q4, rel_used) * sm_scale         # (B,H,S,2S-1)
    col = (jnp.arange(s)[None, :] - jnp.arange(s)[:, None]) + (s - 1)  # (S,S) skew index
    rel_bias = jnp.take_along_axis(qr, jnp.broadcast_to(col, (b, h, s, s)), axis=-1)
    # TODO(synk): the skew gather stays XLA-side; an in-kernel pltpu.roll(stride=1) skew
    # would also remove this (B,H,S,S) bias round trip.

    # --- mask as int8 (4x less HBM traffic than f32; ==0 semantics preserved) ---
    if mask is None:
        mask_i8 = jnp.ones((b, 1, s, s), dtype=jnp.int8)
    else:
        mask_i8 = (jnp.broadcast_to(mask, (b, 1, s, s)) != 0).astype(jnp.int8)

    # --- fused attention core: lane-dense blocks, heads handled inside the kernel ---
    ctx = rel_attention_pallas(qkv, rel_bias, mask_i8,
                               n_heads=h, d_k=d_k, sm_scale=sm_scale)  # (B, S, D)

    # --- output projection W_o (heads already merged lane-dense, no transpose) ---
    out2d = linear_pallas(ctx.reshape(b * s, d), wo.T)
    return out2d.reshape(b, s, d)


# ------------------------------ pure-JAX reference ---------------------------

def _ref_forward(q_in, k_in, v_in, mask, wq, wk, wv, wo, rel_table, h, max_len):
    b, s, d = q_in.shape
    d_k = d // h

    def transform(x, w):
        return (x @ w.T).reshape(b, s, h, d_k).transpose(0, 2, 1, 3)

    q = transform(q_in, wq)
    k = transform(k_in, wk)
    v = transform(v_in, wv)
    r = jnp.arange(s)
    dist = r[None, :] - r[:, None]
    idx = jnp.clip(dist + max_len - 1, 0, 2 * max_len - 2)
    rel = rel_table[idx]
    sc = jnp.einsum("bhid,bhjd->bhij", q, k) / math.sqrt(d_k)
    sr = jnp.einsum("bhid,ijd->bhij", q, rel) / math.sqrt(d_k)
    scores = sc + sr
    if mask is not None:
        scores = jnp.where(mask == 0, -jnp.inf, scores)
    p = jax.nn.softmax(scores, axis=-1)
    x = jnp.einsum("bhij,bhjd->bhid", p, v)
    x = x.transpose(0, 2, 1, 3).reshape(b, s, h * d_k)
    return x @ wo.T


# ---------------------------------- demo ------------------------------------

if __name__ == "__main__":
    B, S, D, H = 2, 16, 128, 4          # batch, seq, d_model (lane-dense), heads
    MAX_LEN = 64
    d_k = D // H

    key = jax.random.PRNGKey(0)
    kx, kq, kk, kv, ko, kr = jax.random.split(key, 6)
    x = jax.random.normal(kx, (B, S, D), dtype=jnp.float32)
    w_scale = 1.0 / math.sqrt(D)
    wq = jax.random.normal(kq, (D, D), dtype=jnp.float32) * w_scale
    wk = jax.random.normal(kk, (D, D), dtype=jnp.float32) * w_scale
    wv = jax.random.normal(kv, (D, D), dtype=jnp.float32) * w_scale
    wo = jax.random.normal(ko, (D, D), dtype=jnp.float32) * w_scale
    rel_table = jax.random.normal(kr, (2 * MAX_LEN - 1, d_k), dtype=jnp.float32) * 0.02

    # causal mask, broadcast to (B, 1, S, S)
    mask = jnp.broadcast_to(
        jnp.tril(jnp.ones((S, S), dtype=jnp.float32))[None, None], (B, 1, S, S))

    out = relative_mha_forward(x, x, x, mask, wq, wk, wv, wo, rel_table,
                               h=H, max_len=MAX_LEN)
    out = jax.block_until_ready(out)

    ref = _ref_forward(x, x, x, mask, wq, wk, wv, wo, rel_table, H, MAX_LEN)
    assert out.shape == (B, S, D)
    # tolerance covers MXU vs XLA matmul differences and the EUP approx reciprocal
    assert jnp.allclose(out, ref, atol=2e-2, rtol=2e-2), float(jnp.max(jnp.abs(out - ref)))

    print("KERNEL_OK")
</pallas_src>

<mosaic_0001>
module attributes {stable_mosaic.version = 11 : i64} {
  func.func @_linear_kernel(%arg0: i32, %arg1: memref<32x128xf32, #tpu.memory_space<vmem>>, %arg2: memref<128x384xf32, #tpu.memory_space<vmem>>, %arg3: memref<32x384xf32, #tpu.memory_space<vmem>>) attributes {dimension_semantics = [#tpu.dimension_semantics<parallel>], iteration_bounds = array<i64: 1>, scalar_prefetch = 0 : i64, scratch_operands = 0 : i64, tpu.core_type = #tpu.core_type<tc>, window_params = [{transform_indices = @transform_0, window_bounds = array<i64: 32, 128>}, {pipeline_mode = #tpu.pipeline_mode<synchronous>, transform_indices = @transform_1, window_bounds = array<i64: 128, 384>}, {transform_indices = @transform_2, window_bounds = array<i64: 32, 384>}]} {
    %c0 = arith.constant 0 : index
    %c0_0 = arith.constant 0 : index
    %0 = vector.load %arg1[%c0, %c0_0] : memref<32x128xf32, #tpu.memory_space<vmem>>, vector<32x128xf32>
    %c0_1 = arith.constant 0 : index
    %c0_2 = arith.constant 0 : index
    %1 = vector.load %arg2[%c0_1, %c0_2] : memref<128x384xf32, #tpu.memory_space<vmem>>, vector<128x384xf32>
    %cst = arith.constant dense<0.000000e+00> : vector<32x384xf32>
    %2 = tpu.matmul %0, %1, %cst {dimension_numbers = #tpu.dot_dimension_numbers<[1], [0], [0], [1], [0, 0, 1, 1], [], []>} : vector<32x128xf32>, vector<128x384xf32>, vector<32x384xf32> -> vector<32x384xf32>
    %c0_3 = arith.constant 0 : index
    %c0_4 = arith.constant 0 : index
    %3 = vector.load %arg3[%c0_3, %c0_4] : memref<32x384xf32, #tpu.memory_space<vmem>>, vector<32x384xf32>
    tpu.vector_store %arg3[%c0_3, %c0_4], %2 {strides = array<i32>} : memref<32x384xf32, #tpu.memory_space<vmem>>, vector<32x384xf32>,
    return
  }
  func.func @transform_0(%arg0: i32) -> (i32, i32) {
    %c0_i32 = arith.constant 0 : i32
    %c0_i32_0 = arith.constant 0 : i32
    return %arg0, %c0_i32 : i32, i32
  }
  func.func @transform_1(%arg0: i32) -> (i32, i32) {
    %c0_i32 = arith.constant 0 : i32
    %c0_i32_0 = arith.constant 0 : i32
    %c0_i32_1 = arith.constant 0 : i32
    return %c0_i32, %c0_i32_0 : i32, i32
  }
  func.func @transform_2(%arg0: i32) -> (i32, i32) {
    %c0_i32 = arith.constant 0 : i32
    %c0_i32_0 = arith.constant 0 : i32
    return %arg0, %c0_i32 : i32, i32
  }
}

</mosaic_0001>

<llo_original>
// kernel: tpu_custom_call.1
$region0: #{tpu_custom_call.1}
  #allocation0 [shape = 'u32[]', space=smem, size = 0x4, offset = 0x4, fixed_abs, tag = 'smem constant byte address 0x4 - core index']
  #allocation1 [shape = 'u32[72,128]{1,0:T(1,128)}', space=vmem, size = 0x9000, scoped, tag = 'internal scratch']
  %s0 = inlined_call_operand.hbm [shape: f32[32,128], index: 0, kind: input, shape index: {}]
  %s1 = inlined_call_operand.hbm [shape: f32[128,384], index: 1, kind: input, shape index: {}]
  %s2 = inlined_call_operand.hbm [shape: f32[32,384], index: 2, kind: output, shape index: {}]
  %s3 = sld [smem:[#allocation0]]
  $region26: #{tpu_custom_call.1} parent=0
    _
  %s5 = ssub.s32 1, %s3
  %s6 = scalar_select 0, %s5, %s3
  $region1: #{tpu_custom_call.1} parent=0
    #allocation2 [shape = 'u8[16384]{0}', space=vmem, size = 0x4000, scoped, tag = 'input window, operand 0, single buffered']
    #allocation3 [shape = 's32[1]{0}', space=sflag, size = 0x4, scoped, tag = 'scoped memory for tpu_custom_call.1']
    #allocation4 [shape = 's32[1]{0}', space=sflag, size = 0x4, scoped, tag = 'scoped memory for tpu_custom_call.1']
    #allocation5 [shape = 'u8[196608]{0}', space=vmem, size = 0x30000, scoped, tag = 'input window, operand 1, single buffered']
    #allocation6 [shape = 's32[1]{0}', space=sflag, size = 0x4, scoped, tag = 'scoped memory for tpu_custom_call.1']
    #allocation7 [shape = 'u8[49152]{0}', space=vmem, size = 0xc000, scoped, tag = 'output window, operand 0, single buffered']
    %7 = vsyncpa [#allocation3], 0
    %8 = vsyncpa [#allocation6], 0
    %9 = vsyncpa [#allocation4], 0
    // Predicated region
    $region2: #{tpu_custom_call.1} parent=1 // pred_check
      _
    $region3: #{tpu_custom_call.1} parent=1 // pred_check_branch
      %11 = sbr.rel (0) target = $region5
    $region4: #{tpu_custom_call.1} parent=1 // pred_region
      %13 = vsyncadd [#allocation3], 0
      %s14 = sshll.u32 %s0, 4
      %s15 = int_to_ptr.hbm [resolvable:$true] %s14
      %s16 = sshll.u32 [#allocation2], 4
      %s17 = int_to_ptr.vmem [resolvable:$true] %s16
      %22 = dma.hbm_to_vmem [thread:$0]  %s15, 512, %s17, [#allocation3], 128, 128, 8
    $region5: #{tpu_custom_call.1} parent=1 // pred_fallthru
      _
    // Predicated region
    $region6: #{tpu_custom_call.1} parent=1 // pred_check
      _
    $region7: #{tpu_custom_call.1} parent=1 // pred_check_branch
      %24 = sbr.rel (0) target = $region9
    $region8: #{tpu_custom_call.1} parent=1 // pred_region
      %26 = vsyncadd [#allocation6], 0
      %s27 = sshll.u32 %s1, 4
      %s28 = int_to_ptr.hbm [resolvable:$true] %s27
      %s29 = sshll.u32 [#allocation5], 4
      %s30 = int_to_ptr.vmem [resolvable:$true] %s29
      %35 = dma.hbm_to_vmem [thread:$0]  %s28, 6144, %s30, [#allocation6], 384, 384, 24
    $region9: #{tpu_custom_call.1} parent=1 // pred_fallthru
      _
    // Predicated region
    $region10: #{tpu_custom_call.1} parent=1 // pred_check
      _
    $region11: #{tpu_custom_call.1} parent=1 // pred_check_branch
      %37 = sbr.rel (0) target = $region13
    $region12: #{tpu_custom_call.1} parent=1 // pred_region
      %39 = dma.done [#allocation3], 512
    $region13: #{tpu_custom_call.1} parent=1 // pred_fallthru
      _
    // Predicated region
    $region14: #{tpu_custom_call.1} parent=1 // pred_check
      _
    $region15: #{tpu_custom_call.1} parent=1 // pred_check_branch
      %41 = sbr.rel (0) target = $region17
    $region16: #{tpu_custom_call.1} parent=1 // pred_region
      %43 = dma.done [#allocation6], 6144
    $region17: #{tpu_custom_call.1} parent=1 // pred_fallthru
      _
    %v44 = vld [vmem:[#allocation2] sm:$0xff]
    %v45 = vld [vmem:[#allocation2 + $0x8] sm:$0xff]
    %v46 = vld [vmem:[#allocation2 + $0x10] sm:$0xff]
    %v47 = vld [vmem:[#allocation2 + $0x18] sm:$0xff]
    %v48 = vld [vmem:[#allocation5] sm:$0xff]
    %v49 = vld [vmem:[#allocation5 + $0x8] sm:$0xff]
    %v50 = vld [vmem:[#allocation5 + $0x10] sm:$0xff]
    %v51 = vld [vmem:[#allocation5 + $0x18] sm:$0xff]
    %v52 = vld [vmem:[#allocation5 + $0x20] sm:$0xff]
    %v53 = vld [vmem:[#allocation5 + $0x28] sm:$0xff]
    %v54 = vld [vmem:[#allocation5 + $0x30] sm:$0xff]
    %v55 = vld [vmem:[#allocation5 + $0x38] sm:$0xff]
    %v56 = vld [vmem:[#allocation5 + $0x40] sm:$0xff]
    %v57 = vld [vmem:[#allocation5 + $0x48] sm:$0xff]
    %v58 = vld [vmem:[#allocation5 + $0x50] sm:$0xff]
    %v59 = vld [vmem:[#allocation5 + $0x58] sm:$0xff]
    %v60 = vld [vmem:[#allocation5 + $0x60] sm:$0xff]
    %v61 = vld [vmem:[#allocation5 + $0x68] sm:$0xff]
    %v62 = vld [vmem:[#allocation5 + $0x70] sm:$0xff]
    %v63 = vld [vmem:[#allocation5 + $0x78] sm:$0xff]
    %v64 = vld [vmem:[#allocation5 + $0x80] sm:$0xff]
    %v65 = vld [vmem:[#allocation5 + $0x88] sm:$0xff]
    %v66 = vld [vmem:[#allocation5 + $0x90] sm:$0xff]
    %v67 = vld [vmem:[#allocation5 + $0x98] sm:$0xff]
    %v68 = vld [vmem:[#allocation5 + $0xa0] sm:$0xff]
    %v69 = vld [vmem:[#allocation5 + $0xa8] sm:$0xff]
    %v70 = vld [vmem:[#allocation5 + $0xb0] sm:$0xff]
    %v71 = vld [vmem:[#allocation5 + $0xb8] sm:$0xff]
    %v72 = vld [vmem:[#allocation5 + $0xc0] sm:$0xff]
    %v73 = vld [vmem:[#allocation5 + $0xc8] sm:$0xff]
    %v74 = vld [vmem:[#allocation5 + $0xd0] sm:$0xff]
    %v75 = vld [vmem:[#allocation5 + $0xd8] sm:$0xff]
    %v76 = vld [vmem:[#allocation5 + $0xe0] sm:$0xff]
    %v77 = vld [vmem:[#allocation5 + $0xe8] sm:$0xff]
    %v78 = vld [vmem:[#allocation5 + $0xf0] sm:$0xff]
    %v79 = vld [vmem:[#allocation5 + $0xf8] sm:$0xff]
    %v80 = vld [vmem:[#allocation5 + $0x100] sm:$0xff]
    %v81 = vld [vmem:[#allocation5 + $0x108] sm:$0xff]
    %v82 = vld [vmem:[#allocation5 + $0x110] sm:$0xff]
    %v83 = vld [vmem:[#allocation5 + $0x118] sm:$0xff]
    %v84 = vld [vmem:[#allocation5 + $0x120] sm:$0xff]
    %v85 = vld [vmem:[#allocation5 + $0x128] sm:$0xff]
    %v86 = vld [vmem:[#allocation5 + $0x130] sm:$0xff]
    %v87 = vld [vmem:[#allocation5 + $0x138] sm:$0xff]
    %v88 = vld [vmem:[#allocation5 + $0x140] sm:$0xff]
    %v89 = vld [vmem:[#allocation5 + $0x148] sm:$0xff]
    %v90 = vld [vmem:[#allocation5 + $0x150] sm:$0xff]
    %v91 = vld [vmem:[#allocation5 + $0x158] sm:$0xff]
    %v92 = vld [vmem:[#allocation5 + $0x160] sm:$0xff]
    %v93 = vld [vmem:[#allocation5 + $0x168] sm:$0xff]
    %v94 = vld [vmem:[#allocation5 + $0x170] sm:$0xff]
    %v95 = vld [vmem:[#allocation5 + $0x178] sm:$0xff]
    %96 = vmatpush.msra.mxu0 %v93
    %97 = vmatpush.msra.mxu0 %v90
    %98 = vmatpush.msra.mxu0 %v87
    %99 = vmatpush.msra.mxu0 %v84
    %100 = vmatpush.msra.mxu0 %v81
    %101 = vmatpush.msra.mxu0 %v78
    %102 = vmatpush.msra.mxu0 %v75
    %103 = vmatpush.msra.mxu0 %v72
    %104 = vmatpush.msra.mxu0 %v69
    %105 = vmatpush.msra.mxu0 %v66
    %106 = vmatpush.msra.mxu0 %v63
    %107 = vmatpush.msra.mxu0 %v60
    %108 = vmatpush.msra.mxu0 %v57
    %109 = vmatpush.msra.mxu0 %v54
    %110 = vmatpush.msra.mxu0 %v51
    %111 = vmatpush.msra.mxu0 %v48
    %112 = vmatmul.f32.gmra.mxu0 %v44
    %v113 = vpop.f32.mrf.mxu0
    %v114 = vadd.f32 0.0, %v113
    %115 = vmatmul.f32.gmra.mxu0 %v45
    %v116 = vpop.f32.mrf.mxu0
    %v117 = vadd.f32 0.0, %v116
    %118 = vmatmul.f32.gmra.mxu0 %v46
    %v119 = vpop.f32.mrf.mxu0
    %v120 = vadd.f32 0.0, %v119
    %121 = vmatmul.f32.gmra.mxu0 %v47
    %v122 = vpop.f32.mrf.mxu0
    %v123 = vadd.f32 0.0, %v122
    %124 = vdwg.mxu0
    %125 = vmatpush.msra.mxu0 %v94
    %126 = vmatpush.msra.mxu0 %v91
    %127 = vmatpush.msra.mxu0 %v88
    %128 = vmatpush.msra.mxu0 %v85
    %129 = vmatpush.msra.mxu0 %v82
    %130 = vmatpush.msra.mxu0 %v79
    %131 = vmatpush.msra.mxu0 %v76
    %132 = vmatpush.msra.mxu0 %v73
    %133 = vmatpush.msra.mxu0 %v70
    %134 = vmatpush.msra.mxu0 %v67
    %135 = vmatpush.msra.mxu0 %v64
    %136 = vmatpush.msra.mxu0 %v61
    %137 = vmatpush.msra.mxu0 %v58
    %138 = vmatpush.msra.mxu0 %v55
    %139 = vmatpush.msra.mxu0 %v52
    %140 = vmatpush.msra.mxu0 %v49
    %141 = vmatmul.f32.gmra.mxu0 %v44
    %v142 = vpop.f32.mrf.mxu0
    %v143 = vadd.f32 0.0, %v142
    %144 = vmatmul.f32.gmra.mxu0 %v45
    %v145 = vpop.f32.mrf.mxu0
    %v146 = vadd.f32 0.0, %v145
    %147 = vmatmul.f32.gmra.mxu0 %v46
    %v148 = vpop.f32.mrf.mxu0
    %v149 = vadd.f32 0.0, %v148
    %150 = vmatmul.f32.gmra.mxu0 %v47
    %v151 = vpop.f32.mrf.mxu0
    %v152 = vadd.f32 0.0, %v151
    %153 = vdwg.mxu0
    %154 = vmatpush.msra.mxu0 %v95
    %155 = vmatpush.msra.mxu0 %v92
    %156 = vmatpush.msra.mxu0 %v89
    %157 = vmatpush.msra.mxu0 %v86
    %158 = vmatpush.msra.mxu0 %v83
    %159 = vmatpush.msra.mxu0 %v80
    %160 = vmatpush.msra.mxu0 %v77
    %161 = vmatpush.msra.mxu0 %v74
    %162 = vmatpush.msra.mxu0 %v71
    %163 = vmatpush.msra.mxu0 %v68
    %164 = vmatpush.msra.mxu0 %v65
    %165 = vmatpush.msra.mxu0 %v62
    %166 = vmatpush.msra.mxu0 %v59
    %167 = vmatpush.msra.mxu0 %v56
    %168 = vmatpush.msra.mxu0 %v53
    %169 = vmatpush.msra.mxu0 %v50
    %170 = vmatmul.f32.gmra.mxu0 %v44
    %v171 = vpop.f32.mrf.mxu0
    %v172 = vadd.f32 0.0, %v171
    %173 = vmatmul.f32.gmra.mxu0 %v45
    %v174 = vpop.f32.mrf.mxu0
    %v175 = vadd.f32 0.0, %v174
    %176 = vmatmul.f32.gmra.mxu0 %v46
    %v177 = vpop.f32.mrf.mxu0
    %v178 = vadd.f32 0.0, %v177
    %179 = vmatmul.f32.gmra.mxu0 %v47
    %v180 = vpop.f32.mrf.mxu0
    %v181 = vadd.f32 0.0, %v180
    %182 = vdwg.mxu0
    %183 = vst [vmem:[#allocation7] sm:$0xff] %v114
    %184 = vst [vmem:[#allocation7 + $0x8] sm:$0xff] %v143
    %185 = vst [vmem:[#allocation7 + $0x10] sm:$0xff] %v172
    %186 = vst [vmem:[#allocation7 + $0x18] sm:$0xff] %v117
    %187 = vst [vmem:[#allocation7 + $0x20] sm:$0xff] %v146
    %188 = vst [vmem:[#allocation7 + $0x28] sm:$0xff] %v175
    %189 = vst [vmem:[#allocation7 + $0x30] sm:$0xff] %v120
    %190 = vst [vmem:[#allocation7 + $0x38] sm:$0xff] %v149
    %191 = vst [vmem:[#allocation7 + $0x40] sm:$0xff] %v178
    %192 = vst [vmem:[#allocation7 + $0x48] sm:$0xff] %v123
    %193 = vst [vmem:[#allocation7 + $0x50] sm:$0xff] %v152
    %194 = vst [vmem:[#allocation7 + $0x58] sm:$0xff] %v181
    // Predicated region
    $region18: #{tpu_custom_call.1} parent=1 // pred_check
      _
    $region19: #{tpu_custom_call.1} parent=1 // pred_check_branch
      %196 = sbr.rel (0) target = $region21
    $region20: #{tpu_custom_call.1} parent=1 // pred_region
      %198 = vsyncadd [#allocation4], 0
      %s199 = sshll.u32 [#allocation7], 4
      %s200 = int_to_ptr.vmem [resolvable:$true] %s199
      %s201 = sshll.u32 %s2, 4
      %s202 = int_to_ptr.hbm [resolvable:$true] %s201
      %207 = dma.vmem_to_hbm [thread:$0]  %s200, 1536, %s202, [#allocation4], 384, 384, 24
    $region21: #{tpu_custom_call.1} parent=1 // pred_fallthru
      _
    // Predicated region
    $region22: #{tpu_custom_call.1} parent=1 // pred_check
      _
    $region23: #{tpu_custom_call.1} parent=1 // pred_check_branch
      %209 = sbr.rel (0) target = $region25
    $region24: #{tpu_custom_call.1} parent=1 // pred_region
      %211 = dma.done [#allocation4], 1536
    $region25: #{tpu_custom_call.1} parent=1 // pred_fallthru
      _
    %212 = vsyncpa [#allocation3], 1
    %213 = vsyncpa [#allocation6], 1
    %214 = vsyncpa [#allocation4], 1

</llo_original>
